<compile_context>
chip_gen: v5e
topology: v5e:2x2
jax: 0.10.0
libtpu: 0.0.40
codegen_flags: <defaults>
</compile_context>

<pallas_src>
import jax
import jax.numpy as jnp
from jax.experimental import pallas as pl
from jax.experimental.pallas import tpu as pltpu

_LANE = 128
_SMALL_BYTES = 128 * 1024   # below this an XLA-fused clamp beats a pallas_call launch
_MIN_GRID = 4               # >= 2*num_cores on v7x -> both TCs engaged; pipeline depth


def _sublane(dtype):
    # native tile second-to-last dim per dtype width
    return {4: 8, 2: 16, 1: 32}.get(jnp.dtype(dtype).itemsize, 8)


def _round_up(x, m):
    return ((x + m - 1) // m) * m


def _is_python_scalar(b):
    return isinstance(b, (int, float)) and not isinstance(b, bool)


def _is_scalar_bound(b):
    if _is_python_scalar(b):
        return True
    try:
        return jnp.ndim(b) == 0
    except TypeError:
        return False


def _per_stream_block_bytes(n_streams):
    """Per-stream block size tuned per TPU generation; stays inside each generation's
    default scoped-VMEM limit with double buffering on all streams."""
    kind = ""
    try:
        kind = jax.devices()[0].device_kind.lower()
    except Exception:
        pass
    if "v7" in kind or "tpu7" in kind:
        # 2 streams x 2 bufs x 4 MiB = 16 MiB, 4 streams x 2 bufs x 2 MiB = 16 MiB
        return (4 << 20) if n_streams <= 2 else (2 << 20)
    if "v6" in kind:
        return 2 << 20            # tensor path: 16 MiB double-buffered, within 32 MiB
    # v5e / v5p / unknown: conservative (16 MiB scoped VMEM default on v5e)
    return 1 << 20


def _clamp_smem_bounds_kernel(p_ref, b_ref, out_ref):
    # b_ref: (2,) in SMEM -> [lower, upper], already rounded to the param dtype.
    p = p_ref[...]
    lo = b_ref[0].astype(p.dtype)
    hi = b_ref[1].astype(p.dtype)
    out_ref[...] = jnp.minimum(jnp.maximum(p, lo), hi)   # lower first, then upper


def _clamp_tensor_bounds_kernel(p_ref, lo_ref, hi_ref, out_ref):
    out_ref[...] = jnp.minimum(jnp.maximum(p_ref[...], lo_ref[...]), hi_ref[...])


def _xla_clamp(param, lower_bound, upper_bound):
    dtype = param.dtype
    lo = jnp.asarray(lower_bound, dtype=dtype)
    hi = jnp.asarray(upper_bound, dtype=dtype)
    return jnp.minimum(jnp.maximum(param, lo), hi)


def enforce_bounds(param, lower_bound, upper_bound, *, force_pallas=False):
    """Pallas/JAX implementation of gpytorch Module.__getattr__ bound enforcement.

    lower_bound / upper_bound may be python scalars (masked_fill_ path), traced 0-d
    arrays, or arrays of param's shape (masked_scatter_ path).
    """
    param = jnp.asarray(param)
    shape, dtype = param.shape, param.dtype
    n = int(param.size)
    if n == 0:
        return param

    itemsize = jnp.dtype(dtype).itemsize
    aligned = (n % _LANE) == 0
    small = (n * itemsize) < _SMALL_BYTES

    if not aligned or (small and not force_pallas):
        # Fast path: KB-sized hyperparameters (the dominant gpytorch case) and ragged
        # sizes go through an XLA-fused clamp -> no slab pad/slice copies, no launch.
        # TODO(synk): a masked in-kernel edge store could cover large ragged params too.
        return _xla_clamp(param, lower_bound, upper_bound)

    both_scalar = _is_scalar_bound(lower_bound) and _is_scalar_bound(upper_bound)
    n_streams = 2 if both_scalar else 4

    rows = n // _LANE
    sub = _sublane(dtype)
    cap_rows = max(sub, (_per_stream_block_bytes(n_streams) // (_LANE * itemsize)) // sub * sub)
    tgt_rows = _round_up(pl.cdiv(rows, _MIN_GRID), sub)   # split for megacore + pipelining
    block_rows = max(sub, min(cap_rows, tgt_rows))
    grid = (pl.cdiv(rows, block_rows),)                   # partial edge block is masked
    blk = pl.BlockSpec((block_rows, _LANE), lambda i: (i, 0))

    p2 = param.reshape(rows, _LANE)                       # layout-preserving, no pad
    compiler_params = pltpu.CompilerParams(dimension_semantics=("parallel",))

    if both_scalar:
        if _is_python_scalar(lower_bound) and _is_python_scalar(upper_bound):
            lo_v, hi_v = lower_bound, upper_bound

            def _const_kernel(p_ref, out_ref):
                p = p_ref[...]
                lo = jnp.asarray(lo_v, dtype=p.dtype)     # compile-time constants
                hi = jnp.asarray(hi_v, dtype=p.dtype)
                out_ref[...] = jnp.minimum(jnp.maximum(p, lo), hi)

            out2 = pl.pallas_call(
                _const_kernel,
                out_shape=jax.ShapeDtypeStruct((rows, _LANE), dtype),
                grid=grid,
                in_specs=[blk],
                out_specs=blk,
                compiler_params=compiler_params,
            )(p2)
        else:
            # Traced / 0-d array bounds: round to the param dtype first (exact
            # masked_fill_ semantics), then ship as a tiny SMEM operand so only the
            # parameter itself streams through HBM.
            sdtype = jnp.int32 if jnp.issubdtype(dtype, jnp.integer) else jnp.float32
            bounds = jnp.stack([
                jnp.asarray(lower_bound, dtype=dtype).astype(sdtype),
                jnp.asarray(upper_bound, dtype=dtype).astype(sdtype),
            ])
            out2 = pl.pallas_call(
                _clamp_smem_bounds_kernel,
                out_shape=jax.ShapeDtypeStruct((rows, _LANE), dtype),
                grid=grid,
                in_specs=[blk, pl.BlockSpec(memory_space=pltpu.MemorySpace.SMEM)],
                out_specs=blk,
                compiler_params=compiler_params,
            )(p2, bounds)
    else:
        # Per-element bounds (masked_scatter_ path). gpytorch requires them to already
        # have the param's size, so this is a reshape (not a materializing broadcast)
        # in the spec-compliant case.
        lo_a = jnp.asarray(lower_bound, dtype=dtype)
        hi_a = jnp.asarray(upper_bound, dtype=dtype)
        if lo_a.shape != shape:
            lo_a = jnp.broadcast_to(lo_a, shape)
        if hi_a.shape != shape:
            hi_a = jnp.broadcast_to(hi_a, shape)
        out2 = pl.pallas_call(
            _clamp_tensor_bounds_kernel,
            out_shape=jax.ShapeDtypeStruct((rows, _LANE), dtype),
            grid=grid,
            in_specs=[blk, blk, blk],
            out_specs=blk,
            compiler_params=compiler_params,
        )(p2, lo_a.reshape(rows, _LANE), hi_a.reshape(rows, _LANE))

    return out2.reshape(shape)


class Module:
    """Minimal JAX port of gpytorch.module.Module.

    Parameters are plain jnp arrays; accessing them through `get_param` applies the
    bound clamp (mirrors __getattr__'s masked_fill_/masked_scatter_ enforcement).
    """

    def __init__(self):
        self._parameters = {}
        self._bounds = {}
        self._variational_strategies = {}

    # TODO(synk): forward() raises NotImplementedError in the reference module; there is
    # no forward compute to translate beyond the bound-clamp hot path.
    def forward(self, *inputs, **kwargs):
        raise NotImplementedError

    def register_parameter(self, name, param, bounds):
        self._parameters[name] = jnp.asarray(param)
        self.set_bounds(**{name: bounds})

    def set_bounds(self, **kwargs):
        for name, (lower, upper) in kwargs.items():
            if name not in self._parameters:
                raise AttributeError("Unknown parameter %s" % name)
            self._bounds[name] = [lower, upper]
        return self

    def bound_for(self, name):
        return self._bounds[name]

    def register_variational_strategy(self, name):
        self._variational_strategies[name] = None

    def initialize(self, **kwargs):
        for name, val in kwargs.items():
            if name not in self._parameters:
                raise AttributeError("Unknown parameter %s" % name)
            p = self._parameters[name]
            val = jnp.asarray(val, dtype=p.dtype)
            self._parameters[name] = jnp.broadcast_to(val, p.shape)
            lower, upper = self._bounds[name]
            if bool(jnp.any(self._parameters[name] < lower)):
                raise AttributeError("Parameter %s exceeds lower bound" % name)
            if bool(jnp.any(self._parameters[name] > upper)):
                raise AttributeError("Parameter %s exceeds upper bound" % name)
        return self

    def get_param(self, name):
        """Equivalent of __getattr__ on a registered parameter: clamp to bounds."""
        param = self._parameters[name]
        lower, upper = self._bounds[name]
        clamped = enforce_bounds(param, lower, upper)
        self._parameters[name] = clamped  # in-place semantics of masked_fill_
        return clamped

    def named_parameter_bounds(self):
        for name in self._parameters:
            yield name, self.bound_for(name)

    def parameter_bounds(self):
        for _, bound in self.named_parameter_bounds():
            yield bound


if __name__ == "__main__":
    key = jax.random.PRNGKey(0)
    keys = jax.random.split(key, 8)

    mod = Module()

    # -- small params (typical gpytorch hyperparameters): XLA-fused fast path ---------
    p_scalar = jax.random.normal(keys[0], (2, 4, 16, 16), dtype=jnp.float32) * 3.0
    mod.register_parameter("log_lengthscale", p_scalar, bounds=(-1.5, 1.5))

    p_tensor = jax.random.normal(keys[1], (8, 32), dtype=jnp.float32) * 2.0
    lo_t = jnp.full((8, 32), -0.75, dtype=jnp.float32)
    hi_t = jax.random.uniform(keys[2], (8, 32), dtype=jnp.float32) + 0.5
    mod.register_parameter("log_noise", p_tensor, bounds=(lo_t, hi_t))

    p_bf16 = (jax.random.normal(keys[3], (2, 8, 32), dtype=jnp.float32) * 2.0).astype(jnp.bfloat16)
    mod.register_parameter("log_outputscale", p_bf16, bounds=(-1.0, 1.0))

    # -- larger params: Pallas streaming-clamp path ------------------------------------
    # scalar python bounds -> constant-bounds kernel (2 HBM streams)
    p_big_scalar = jax.random.normal(keys[4], (512, 1024), dtype=jnp.float32) * 3.0
    mod.register_parameter("inducing_values", p_big_scalar, bounds=(-2.0, 2.0))

    # per-element tensor bounds -> 4-stream kernel
    p_big_tensor = jax.random.normal(keys[5], (256, 512), dtype=jnp.float32) * 2.0
    lo_b = jnp.full((256, 512), -1.25, dtype=jnp.float32)
    hi_b = jax.random.uniform(keys[6], (256, 512), dtype=jnp.float32) + 0.25
    mod.register_parameter("chol_factor", p_big_tensor, bounds=(lo_b, hi_b))

    # 0-d array bounds -> SMEM-bounds kernel, bf16 param exercises (16,128) tiles
    p_big_bf16 = (jax.random.normal(keys[7], (256, 1024), dtype=jnp.float32) * 2.0).astype(jnp.bfloat16)
    mod.register_parameter("log_mixture_weights", p_big_bf16,
                           bounds=(jnp.float32(-1.0), jnp.float32(1.0)))

    names = ["log_lengthscale", "log_noise", "log_outputscale",
             "inducing_values", "chol_factor", "log_mixture_weights"]
    outs = {name: mod.get_param(name) for name in names}

    # forced-Pallas coverage of a partial edge block (rows=39, block_rows=16 -> masked edge)
    p_edge = jax.random.normal(keys[0], (13, 384), dtype=jnp.float32) * 2.0
    out_edge = enforce_bounds(p_edge, -0.5, 0.5, force_pallas=True)

    jax.block_until_ready((tuple(outs.values()), out_edge))

    def ref_clamp(p, lo, hi):
        lo = jnp.broadcast_to(jnp.asarray(lo, dtype=p.dtype), p.shape)
        hi = jnp.broadcast_to(jnp.asarray(hi, dtype=p.dtype), p.shape)
        return jnp.minimum(jnp.maximum(p, lo), hi)   # lower first, then upper

    originals = {
        "log_lengthscale": p_scalar, "log_noise": p_tensor, "log_outputscale": p_bf16,
        "inducing_values": p_big_scalar, "chol_factor": p_big_tensor,
        "log_mixture_weights": p_big_bf16,
    }
    refs = {
        "log_lengthscale": ref_clamp(p_scalar, -1.5, 1.5),
        "log_noise": ref_clamp(p_tensor, lo_t, hi_t),
        "log_outputscale": ref_clamp(p_bf16, -1.0, 1.0),
        "inducing_values": ref_clamp(p_big_scalar, -2.0, 2.0),
        "chol_factor": ref_clamp(p_big_tensor, lo_b, hi_b),
        "log_mixture_weights": ref_clamp(p_big_bf16, -1.0, 1.0),
    }
    for name in names:
        out = outs[name]
        assert out.shape == originals[name].shape and out.dtype == originals[name].dtype, name
        assert bool(jnp.array_equal(out, refs[name])), name
    assert out_edge.shape == p_edge.shape and out_edge.dtype == p_edge.dtype
    assert bool(jnp.array_equal(out_edge, ref_clamp(p_edge, -0.5, 0.5)))

    print("KERNEL_OK")
</pallas_src>

<mosaic_0001>
module attributes {stable_mosaic.version = 11 : i64} {
  func.func @_const_kernel(%arg0: i32, %arg1: memref<1024x128xf32, #tpu.memory_space<vmem>>, %arg2: memref<1024x128xf32, #tpu.memory_space<vmem>>) attributes {dimension_semantics = [#tpu.dimension_semantics<parallel>], iteration_bounds = array<i64: 4>, scalar_prefetch = 0 : i64, scratch_operands = 0 : i64, tpu.core_type = #tpu.core_type<tc>, window_params = [{transform_indices = @transform_0, window_bounds = array<i64: 1024, 128>}, {transform_indices = @transform_1, window_bounds = array<i64: 1024, 128>}]} {
    %c0 = arith.constant 0 : index
    %c0_0 = arith.constant 0 : index
    %0 = vector.load %arg1[%c0, %c0_0] : memref<1024x128xf32, #tpu.memory_space<vmem>>, vector<1024x128xf32>
    %cst = arith.constant -2.000000e+00 : f32
    %1 = vector.broadcast %cst : f32 to vector<1024x128xf32>
    %2 = arith.maximumf %0, %1 : vector<1024x128xf32>
    %cst_1 = arith.constant 2.000000e+00 : f32
    %3 = vector.broadcast %cst_1 : f32 to vector<1024x128xf32>
    %4 = arith.minimumf %2, %3 : vector<1024x128xf32>
    %c0_2 = arith.constant 0 : index
    %c0_3 = arith.constant 0 : index
    %5 = vector.load %arg2[%c0_2, %c0_3] : memref<1024x128xf32, #tpu.memory_space<vmem>>, vector<1024x128xf32>
    tpu.vector_store %arg2[%c0_2, %c0_3], %4 {strides = array<i32>} : memref<1024x128xf32, #tpu.memory_space<vmem>>, vector<1024x128xf32>,
    return
  }
  func.func @transform_0(%arg0: i32) -> (i32, i32) {
    %c0_i32 = arith.constant 0 : i32
    %c0_i32_0 = arith.constant 0 : i32
    return %arg0, %c0_i32 : i32, i32
  }
  func.func @transform_1(%arg0: i32) -> (i32, i32) {
    %c0_i32 = arith.constant 0 : i32
    %c0_i32_0 = arith.constant 0 : i32
    return %arg0, %c0_i32 : i32, i32
  }
}

</mosaic_0001>

<llo_original>
// kernel: tpu_custom_call.1
$region0: #{tpu_custom_call.1}
  #allocation0 [shape = 'u32[]', space=smem, size = 0x4, offset = 0x4, fixed_abs, tag = 'smem constant byte address 0x4 - core index']
  #allocation1 [shape = 'u32[72,128]{1,0:T(1,128)}', space=vmem, size = 0x9000, scoped, tag = 'internal scratch']
  %s0 = inlined_call_operand.hbm [shape: f32[4096,128], index: 0, kind: input, shape index: {}]
  %s1 = inlined_call_operand.hbm [shape: f32[4096,128], index: 1, kind: output, shape index: {}]
  %s2 = sld [smem:[#allocation0]]
  $region41: #{tpu_custom_call.1} parent=0
    _
  %s4 = ssub.s32 1, %s2
  %s5 = scalar_select 0, %s4, %s2
  $region1: #{tpu_custom_call.1} parent=0
    #allocation2 [shape = 'u8[1048576]{0}', space=vmem, size = 0x100000, scoped, tag = 'input window, operand 0']
    #allocation3 [shape = 's32[2]{0}', space=sflag, size = 0x8, scoped, tag = 'scoped memory for tpu_custom_call.1']
    #allocation4 [shape = 's32[2]{0}', space=sflag, size = 0x8, scoped, tag = 'scoped memory for tpu_custom_call.1']
    #allocation5 [shape = 'u8[1048576]{0}', space=vmem, size = 0x100000, scoped, tag = 'output window, operand 0']
    %6 = vsyncpa [#allocation3], 0
    %s7 = scalar_lea.sflag [#allocation3], 1
    %8 = vsyncpa %s7, 0
    %9 = vsyncpa [#allocation4], 0
    %s10 = scalar_lea.sflag [#allocation4], 1
    %11 = vsyncpa %s10, 0
    loop: start=0, step=1, limit=6
    $region2: #{tpu_custom_call.1} parent=1 // loop_pre_header
      _
    $region3: #{tpu_custom_call.1} parent=1 // loop_header
      %s13 = sphi 0, %s17
      %p14 = scmp.ge.s32.totalorder %s13, 6
      %s23 = sphi 0, %s25
      %s26 = sphi 0, %s23
      %s27 = sphi 0, %s26
      %s43 = sphi 0, %s27
      %s49 = sphi 0, %s51
      %s52 = sphi 0, %s49
      %s53 = sphi 0, %s52
      %s69 = sphi 0, %s53
    $region4: #{tpu_custom_call.1} parent=1 // loop_header_branch
      %16 = sbr.rel (%p14) target = $region8
    $region5: #{tpu_custom_call.1} parent=1 // loop_body
      %s18 = ssub.s32 %s13, 1
      %s19 = ssub.s32 %s13, 2
      %s20 = sadd.s32 %s13, 1
      %s21 = ssub.s32 %s13, %s20
      %p22 = scmp.eq.s32.totalorder %s21, 0
      %s24 = sadd.s32 %s23, 1
      %s25 = scalar_select %p22, %s23, %s24
      %p28 = pneg %p22
      %p29 = scmp.eq.s32.totalorder %s13, 3
      %p30 = por %p28, %p29
      %p31 = scmp.ne.s32.totalorder %s23, %s26
      %p32 = scmp.eq.s32.totalorder %s13, 0
      %p33 = por %p31, %p32
      %p34 = scmp.ne.s32.totalorder %s23, %s26
      %p35 = scmp.eq.s32.totalorder %s18, 3
      %p36 = por %p34, %p35
      %p37 = scmp.ne.s32.totalorder %s26, %s27
      %p38 = scmp.eq.s32.totalorder %s18, 0
      %p39 = por %p37, %p38
      %p40 = scmp.ne.s32.totalorder %s26, %s27
      %p41 = scmp.eq.s32.totalorder %s19, 3
      %p42 = por %p40, %p41
      %p44 = scmp.ne.s32.totalorder %s27, %s43
      %p45 = scmp.eq.s32.totalorder %s19, 0
      %p46 = por %p44, %p45
      %s47 = ssub.s32 %s13, %s20
      %p48 = scmp.eq.s32.totalorder %s47, 0
      %s50 = sadd.s32 %s49, 1
      %s51 = scalar_select %p48, %s49, %s50
      %p54 = pneg %p48
      %p55 = scmp.eq.s32.totalorder %s13, 3
      %p56 = por %p54, %p55
      %p57 = scmp.ne.s32.totalorder %s49, %s52
      %p58 = scmp.eq.s32.totalorder %s13, 0
      %p59 = por %p57, %p58
      %p60 = scmp.ne.s32.totalorder %s49, %s52
      %p61 = scmp.eq.s32.totalorder %s18, 3
      %p62 = por %p60, %p61
      %p63 = scmp.ne.s32.totalorder %s52, %s53
      %p64 = scmp.eq.s32.totalorder %s18, 0
      %p65 = por %p63, %p64
      %p66 = scmp.ne.s32.totalorder %s52, %s53
      %p67 = scmp.eq.s32.totalorder %s19, 3
      %p68 = por %p66, %p67
      %p70 = scmp.ne.s32.totalorder %s53, %s69
      %p71 = scmp.eq.s32.totalorder %s19, 0
      %p72 = por %p70, %p71
      %p73 = scmp.le.s32.totalorder 1, %s13
      %p74 = scmp.lt.s32.totalorder %s13, 5
      %p75 = pnand %p73, %p74
      %p76 = pneg %p75
      // Predicated region
      $region9: #{tpu_custom_call.1} parent=5 // pred_check
        _
      $region10: #{tpu_custom_call.1} parent=5 // pred_check_branch
        %78 = sbr.rel (%p75) target = $region12
      $region11: #{tpu_custom_call.1} parent=5 // pred_region
        %s79 = ssub.s32 %s13, 1
      $region12: #{tpu_custom_call.1} parent=5 // pred_fallthru
        _
      %p80 = scmp.lt.s32.totalorder %s13, 4
      // Predicated region
      $region13: #{tpu_custom_call.1} parent=5 // pred_check
        %p81 = pneg %p80
      $region14: #{tpu_custom_call.1} parent=5 // pred_check_branch
        %83 = sbr.rel (%p81) target = $region16
      $region15: #{tpu_custom_call.1} parent=5 // pred_region
        // Predicated region
        $region17: #{tpu_custom_call.1} parent=15 // pred_check
          %p84 = pneg %p33
        $region18: #{tpu_custom_call.1} parent=15 // pred_check_branch
          %86 = sbr.rel (%p84) target = $region20
        $region19: #{tpu_custom_call.1} parent=15 // pred_region
          %s87 = sand.u32 %s23, 1
          %s88 = scalar_lea.sflag [#allocation3], %s87
          %s89 = sand.u32 %s23, 1
          %s90 = smul.addr %s89, 1024
          %s91 = scalar_lea.vmem [#allocation2], %s90
          %s92 = smul.u32 128, %s13
          %94 = vsyncadd %s88, 0
          %s95 = smul.addr %s92, 8
          %s96 = scalar_lea.hbm %s0, %s95
          %s97 = sshll.u32 %s96, 4
          %s98 = int_to_ptr.hbm [resolvable:$true] %s97
          %s99 = sshll.u32 %s91, 4
          %s100 = int_to_ptr.vmem [resolvable:$true] %s99
          %105 = dma.hbm_to_vmem [thread:$0]  %s98, 16384, %s100, %s88, 128, 128, 8
        $region20: #{tpu_custom_call.1} parent=15 // pred_fallthru
          _
      $region16: #{tpu_custom_call.1} parent=5 // pred_fallthru
        _
      %p106 = scmp.le.s32.totalorder 1, %s13
      %p107 = scmp.lt.s32.totalorder %s13, 5
      %p108 = pnand %p106, %p107
      %p109 = pneg %p108
      // Predicated region
      $region21: #{tpu_custom_call.1} parent=5 // pred_check
        _
      $region22: #{tpu_custom_call.1} parent=5 // pred_check_branch
        %111 = sbr.rel (%p108) target = $region24
      $region23: #{tpu_custom_call.1} parent=5 // pred_region
        %s112 = ssub.s32 %s13, 1
        %s113 = sand.u32 %s26, 1
        %s114 = scalar_lea.sflag [#allocation3], %s113
        %s115 = sand.u32 %s26, 1
        %s116 = smul.addr %s115, 1024
        %s117 = scalar_lea.vmem [#allocation2], %s116
        // Predicated region
        $region25: #{tpu_custom_call.1} parent=23 // pred_check
          %p118 = pneg %p39
        $region26: #{tpu_custom_call.1} parent=23 // pred_check_branch
          %120 = sbr.rel (%p118) target = $region28
        $region27: #{tpu_custom_call.1} parent=23 // pred_region
          %122 = dma.done %s114, 16384
        $region28: #{tpu_custom_call.1} parent=23 // pred_fallthru
          _
        %s123 = sand.u32 %s26, 1
        %s124 = scalar_lea.sflag [#allocation3], %s123
        %s125 = sand.u32 %s26, 1
        %s126 = smul.addr %s125, 1024
        %s127 = scalar_lea.vmem [#allocation2], %s126
        %p128 = pneg %p39
        %p129 = pneg %p36
        %p130 = pneg %p65
        %p131 = pneg %p62
        %s132 = sand.u32 %s52, 1
        %s133 = scalar_lea.sflag [#allocation4], %s132
        %s134 = sand.u32 %s52, 1
        %s135 = smul.addr %s134, 1024
        %s136 = scalar_lea.vmem [#allocation5], %s135
        %s137 = smul.u32 128, %s18
        %s138 = smul.u32 128, %s18
        %v139 = vld [vmem:[%s117] sm:$0xff]
        %v140 = vld [vmem:[%s117 + $0x8] sm:$0xff]
        %v141 = vld [vmem:[%s117 + $0x10] sm:$0xff]
        %v142 = vld [vmem:[%s117 + $0x18] sm:$0xff]
        %v143 = vld [vmem:[%s117 + $0x20] sm:$0xff]
        %v144 = vld [vmem:[%s117 + $0x28] sm:$0xff]
        %v145 = vld [vmem:[%s117 + $0x30] sm:$0xff]
        %v146 = vld [vmem:[%s117 + $0x38] sm:$0xff]
        %v147 = vld [vmem:[%s117 + $0x40] sm:$0xff]
        %v148 = vld [vmem:[%s117 + $0x48] sm:$0xff]
        %v149 = vld [vmem:[%s117 + $0x50] sm:$0xff]
        %v150 = vld [vmem:[%s117 + $0x58] sm:$0xff]
        %v151 = vld [vmem:[%s117 + $0x60] sm:$0xff]
        %v152 = vld [vmem:[%s117 + $0x68] sm:$0xff]
        %v153 = vld [vmem:[%s117 + $0x70] sm:$0xff]
        %v154 = vld [vmem:[%s117 + $0x78] sm:$0xff]
        %v155 = vld [vmem:[%s117 + $0x80] sm:$0xff]
        %v156 = vld [vmem:[%s117 + $0x88] sm:$0xff]
        %v157 = vld [vmem:[%s117 + $0x90] sm:$0xff]
        %v158 = vld [vmem:[%s117 + $0x98] sm:$0xff]
        %v159 = vld [vmem:[%s117 + $0xa0] sm:$0xff]
        %v160 = vld [vmem:[%s117 + $0xa8] sm:$0xff]
        %v161 = vld [vmem:[%s117 + $0xb0] sm:$0xff]
        %v162 = vld [vmem:[%s117 + $0xb8] sm:$0xff]
        %v163 = vld [vmem:[%s117 + $0xc0] sm:$0xff]
        %v164 = vld [vmem:[%s117 + $0xc8] sm:$0xff]
        %v165 = vld [vmem:[%s117 + $0xd0] sm:$0xff]
        %v166 = vld [vmem:[%s117 + $0xd8] sm:$0xff]
        %v167 = vld [vmem:[%s117 + $0xe0] sm:$0xff]
        %v168 = vld [vmem:[%s117 + $0xe8] sm:$0xff]
        %v169 = vld [vmem:[%s117 + $0xf0] sm:$0xff]
        %v170 = vld [vmem:[%s117 + $0xf8] sm:$0xff]
        %v171 = vld [vmem:[%s117 + $0x100] sm:$0xff]
        %v172 = vld [vmem:[%s117 + $0x108] sm:$0xff]
        %v173 = vld [vmem:[%s117 + $0x110] sm:$0xff]
        %v174 = vld [vmem:[%s117 + $0x118] sm:$0xff]
        %v175 = vld [vmem:[%s117 + $0x120] sm:$0xff]
        %v176 = vld [vmem:[%s117 + $0x128] sm:$0xff]
        %v177 = vld [vmem:[%s117 + $0x130] sm:$0xff]
        %v178 = vld [vmem:[%s117 + $0x138] sm:$0xff]
        %v179 = vld [vmem:[%s117 + $0x140] sm:$0xff]
        %v180 = vld [vmem:[%s117 + $0x148] sm:$0xff]
        %v181 = vld [vmem:[%s117 + $0x150] sm:$0xff]
        %v182 = vld [vmem:[%s117 + $0x158] sm:$0xff]
        %v183 = vld [vmem:[%s117 + $0x160] sm:$0xff]
        %v184 = vld [vmem:[%s117 + $0x168] sm:$0xff]
        %v185 = vld [vmem:[%s117 + $0x170] sm:$0xff]
        %v186 = vld [vmem:[%s117 + $0x178] sm:$0xff]
        %v187 = vld [vmem:[%s117 + $0x180] sm:$0xff]
        %v188 = vld [vmem:[%s117 + $0x188] sm:$0xff]
        %v189 = vld [vmem:[%s117 + $0x190] sm:$0xff]
        %v190 = vld [vmem:[%s117 + $0x198] sm:$0xff]
        %v191 = vld [vmem:[%s117 + $0x1a0] sm:$0xff]
        %v192 = vld [vmem:[%s117 + $0x1a8] sm:$0xff]
        %v193 = vld [vmem:[%s117 + $0x1b0] sm:$0xff]
        %v194 = vld [vmem:[%s117 + $0x1b8] sm:$0xff]
        %v195 = vld [vmem:[%s117 + $0x1c0] sm:$0xff]
        %v196 = vld [vmem:[%s117 + $0x1c8] sm:$0xff]
        %v197 = vld [vmem:[%s117 + $0x1d0] sm:$0xff]
        %v198 = vld [vmem:[%s117 + $0x1d8] sm:$0xff]
        %v199 = vld [vmem:[%s117 + $0x1e0] sm:$0xff]
        %v200 = vld [vmem:[%s117 + $0x1e8] sm:$0xff]
        %v201 = vld [vmem:[%s117 + $0x1f0] sm:$0xff]
        %v202 = vld [vmem:[%s117 + $0x1f8] sm:$0xff]
        %v203 = vld [vmem:[%s117 + $0x200] sm:$0xff]
        %v204 = vld [vmem:[%s117 + $0x208] sm:$0xff]
        %v205 = vld [vmem:[%s117 + $0x210] sm:$0xff]
        %v206 = vld [vmem:[%s117 + $0x218] sm:$0xff]
        %v207 = vld [vmem:[%s117 + $0x220] sm:$0xff]
        %v208 = vld [vmem:[%s117 + $0x228] sm:$0xff]
        %v209 = vld [vmem:[%s117 + $0x230] sm:$0xff]
        %v210 = vld [vmem:[%s117 + $0x238] sm:$0xff]
        %v211 = vld [vmem:[%s117 + $0x240] sm:$0xff]
        %v212 = vld [vmem:[%s117 + $0x248] sm:$0xff]
        %v213 = vld [vmem:[%s117 + $0x250] sm:$0xff]
        %v214 = vld [vmem:[%s117 + $0x258] sm:$0xff]
        %v215 = vld [vmem:[%s117 + $0x260] sm:$0xff]
        %v216 = vld [vmem:[%s117 + $0x268] sm:$0xff]
        %v217 = vld [vmem:[%s117 + $0x270] sm:$0xff]
        %v218 = vld [vmem:[%s117 + $0x278] sm:$0xff]
        %v219 = vld [vmem:[%s117 + $0x280] sm:$0xff]
        %v220 = vld [vmem:[%s117 + $0x288] sm:$0xff]
        %v221 = vld [vmem:[%s117 + $0x290] sm:$0xff]
        %v222 = vld [vmem:[%s117 + $0x298] sm:$0xff]
        %v223 = vld [vmem:[%s117 + $0x2a0] sm:$0xff]
        %v224 = vld [vmem:[%s117 + $0x2a8] sm:$0xff]
        %v225 = vld [vmem:[%s117 + $0x2b0] sm:$0xff]
        %v226 = vld [vmem:[%s117 + $0x2b8] sm:$0xff]
        %v227 = vld [vmem:[%s117 + $0x2c0] sm:$0xff]
        %v228 = vld [vmem:[%s117 + $0x2c8] sm:$0xff]
        %v229 = vld [vmem:[%s117 + $0x2d0] sm:$0xff]
        %v230 = vld [vmem:[%s117 + $0x2d8] sm:$0xff]
        %v231 = vld [vmem:[%s117 + $0x2e0] sm:$0xff]
        %v232 = vld [vmem:[%s117 + $0x2e8] sm:$0xff]
        %v233 = vld [vmem:[%s117 + $0x2f0] sm:$0xff]
        %v234 = vld [vmem:[%s117 + $0x2f8] sm:$0xff]
        %v235 = vld [vmem:[%s117 + $0x300] sm:$0xff]
        %v236 = vld [vmem:[%s117 + $0x308] sm:$0xff]
        %v237 = vld [vmem:[%s117 + $0x310] sm:$0xff]
        %v238 = vld [vmem:[%s117 + $0x318] sm:$0xff]
        %v239 = vld [vmem:[%s117 + $0x320] sm:$0xff]
        %v240 = vld [vmem:[%s117 + $0x328] sm:$0xff]
        %v241 = vld [vmem:[%s117 + $0x330] sm:$0xff]
        %v242 = vld [vmem:[%s117 + $0x338] sm:$0xff]
        %v243 = vld [vmem:[%s117 + $0x340] sm:$0xff]
        %v244 = vld [vmem:[%s117 + $0x348] sm:$0xff]
        %v245 = vld [vmem:[%s117 + $0x350] sm:$0xff]
        %v246 = vld [vmem:[%s117 + $0x358] sm:$0xff]
        %v247 = vld [vmem:[%s117 + $0x360] sm:$0xff]
        %v248 = vld [vmem:[%s117 + $0x368] sm:$0xff]
        %v249 = vld [vmem:[%s117 + $0x370] sm:$0xff]
        %v250 = vld [vmem:[%s117 + $0x378] sm:$0xff]
        %v251 = vld [vmem:[%s117 + $0x380] sm:$0xff]
        %v252 = vld [vmem:[%s117 + $0x388] sm:$0xff]
        %v253 = vld [vmem:[%s117 + $0x390] sm:$0xff]
        %v254 = vld [vmem:[%s117 + $0x398] sm:$0xff]
        %v255 = vld [vmem:[%s117 + $0x3a0] sm:$0xff]
        %v256 = vld [vmem:[%s117 + $0x3a8] sm:$0xff]
        %v257 = vld [vmem:[%s117 + $0x3b0] sm:$0xff]
        %v258 = vld [vmem:[%s117 + $0x3b8] sm:$0xff]
        %v259 = vld [vmem:[%s117 + $0x3c0] sm:$0xff]
        %v260 = vld [vmem:[%s117 + $0x3c8] sm:$0xff]
        %v261 = vld [vmem:[%s117 + $0x3d0] sm:$0xff]
        %v262 = vld [vmem:[%s117 + $0x3d8] sm:$0xff]
        %v263 = vld [vmem:[%s117 + $0x3e0] sm:$0xff]
        %v264 = vld [vmem:[%s117 + $0x3e8] sm:$0xff]
        %v265 = vld [vmem:[%s117 + $0x3f0] sm:$0xff]
        %v266 = vld [vmem:[%s117 + $0x3f8] sm:$0xff]
        %v267 = vmax.f32 %v139, -2.0
        %v268 = vmax.f32 %v140, -2.0
        %v269 = vmax.f32 %v141, -2.0
        %v270 = vmax.f32 %v142, -2.0
        %v271 = vmax.f32 %v143, -2.0
        %v272 = vmax.f32 %v144, -2.0
        %v273 = vmax.f32 %v145, -2.0
        %v274 = vmax.f32 %v146, -2.0
        %v275 = vmax.f32 %v147, -2.0
        %v276 = vmax.f32 %v148, -2.0
        %v277 = vmax.f32 %v149, -2.0
        %v278 = vmax.f32 %v150, -2.0
        %v279 = vmax.f32 %v151, -2.0
        %v280 = vmax.f32 %v152, -2.0
        %v281 = vmax.f32 %v153, -2.0
        %v282 = vmax.f32 %v154, -2.0
        %v283 = vmax.f32 %v155, -2.0
        %v284 = vmax.f32 %v156, -2.0
        %v285 = vmax.f32 %v157, -2.0
        %v286 = vmax.f32 %v158, -2.0
        %v287 = vmax.f32 %v159, -2.0
        %v288 = vmax.f32 %v160, -2.0
        %v289 = vmax.f32 %v161, -2.0
        %v290 = vmax.f32 %v162, -2.0
        %v291 = vmax.f32 %v163, -2.0
        %v292 = vmax.f32 %v164, -2.0
        %v293 = vmax.f32 %v165, -2.0
        %v294 = vmax.f32 %v166, -2.0
        %v295 = vmax.f32 %v167, -2.0
        %v296 = vmax.f32 %v168, -2.0
        %v297 = vmax.f32 %v169, -2.0
        %v298 = vmax.f32 %v170, -2.0
        %v299 = vmax.f32 %v171, -2.0
        %v300 = vmax.f32 %v172, -2.0
        %v301 = vmax.f32 %v173, -2.0
        %v302 = vmax.f32 %v174, -2.0
        %v303 = vmax.f32 %v175, -2.0
        %v304 = vmax.f32 %v176, -2.0
        %v305 = vmax.f32 %v177, -2.0
        %v306 = vmax.f32 %v178, -2.0
        %v307 = vmax.f32 %v179, -2.0
        %v308 = vmax.f32 %v180, -2.0
        %v309 = vmax.f32 %v181, -2.0
        %v310 = vmax.f32 %v182, -2.0
        %v311 = vmax.f32 %v183, -2.0
        %v312 = vmax.f32 %v184, -2.0
        %v313 = vmax.f32 %v185, -2.0
        %v314 = vmax.f32 %v186, -2.0
        %v315 = vmax.f32 %v187, -2.0
        %v316 = vmax.f32 %v188, -2.0
        %v317 = vmax.f32 %v189, -2.0
        %v318 = vmax.f32 %v190, -2.0
        %v319 = vmax.f32 %v191, -2.0
        %v320 = vmax.f32 %v192, -2.0
        %v321 = vmax.f32 %v193, -2.0
        %v322 = vmax.f32 %v194, -2.0
        %v323 = vmax.f32 %v195, -2.0
        %v324 = vmax.f32 %v196, -2.0
        %v325 = vmax.f32 %v197, -2.0
        %v326 = vmax.f32 %v198, -2.0
        %v327 = vmax.f32 %v199, -2.0
        %v328 = vmax.f32 %v200, -2.0
        %v329 = vmax.f32 %v201, -2.0
        %v330 = vmax.f32 %v202, -2.0
        %v331 = vmax.f32 %v203, -2.0
        %v332 = vmax.f32 %v204, -2.0
        %v333 = vmax.f32 %v205, -2.0
        %v334 = vmax.f32 %v206, -2.0
        %v335 = vmax.f32 %v207, -2.0
        %v336 = vmax.f32 %v208, -2.0
        %v337 = vmax.f32 %v209, -2.0
        %v338 = vmax.f32 %v210, -2.0
        %v339 = vmax.f32 %v211, -2.0
        %v340 = vmax.f32 %v212, -2.0
        %v341 = vmax.f32 %v213, -2.0
        %v342 = vmax.f32 %v214, -2.0
        %v343 = vmax.f32 %v215, -2.0
        %v344 = vmax.f32 %v216, -2.0
        %v345 = vmax.f32 %v217, -2.0
        %v346 = vmax.f32 %v218, -2.0
        %v347 = vmax.f32 %v219, -2.0
        %v348 = vmax.f32 %v220, -2.0
        %v349 = vmax.f32 %v221, -2.0
        %v350 = vmax.f32 %v222, -2.0
        %v351 = vmax.f32 %v223, -2.0
        %v352 = vmax.f32 %v224, -2.0
        %v353 = vmax.f32 %v225, -2.0
        %v354 = vmax.f32 %v226, -2.0
        %v355 = vmax.f32 %v227, -2.0
        %v356 = vmax.f32 %v228, -2.0
        %v357 = vmax.f32 %v229, -2.0
        %v358 = vmax.f32 %v230, -2.0
        %v359 = vmax.f32 %v231, -2.0
        %v360 = vmax.f32 %v232, -2.0
        %v361 = vmax.f32 %v233, -2.0
        %v362 = vmax.f32 %v234, -2.0
        %v363 = vmax.f32 %v235, -2.0
        %v364 = vmax.f32 %v236, -2.0
        %v365 = vmax.f32 %v237, -2.0
        %v366 = vmax.f32 %v238, -2.0
        %v367 = vmax.f32 %v239, -2.0
        %v368 = vmax.f32 %v240, -2.0
        %v369 = vmax.f32 %v241, -2.0
        %v370 = vmax.f32 %v242, -2.0
        %v371 = vmax.f32 %v243, -2.0
        %v372 = vmax.f32 %v244, -2.0
        %v373 = vmax.f32 %v245, -2.0
        %v374 = vmax.f32 %v246, -2.0
        %v375 = vmax.f32 %v247, -2.0
        %v376 = vmax.f32 %v248, -2.0
        %v377 = vmax.f32 %v249, -2.0
        %v378 = vmax.f32 %v250, -2.0
        %v379 = vmax.f32 %v251, -2.0
        %v380 = vmax.f32 %v252, -2.0
        %v381 = vmax.f32 %v253, -2.0
        %v382 = vmax.f32 %v254, -2.0
        %v383 = vmax.f32 %v255, -2.0
        %v384 = vmax.f32 %v256, -2.0
        %v385 = vmax.f32 %v257, -2.0
        %v386 = vmax.f32 %v258, -2.0
        %v387 = vmax.f32 %v259, -2.0
        %v388 = vmax.f32 %v260, -2.0
        %v389 = vmax.f32 %v261, -2.0
        %v390 = vmax.f32 %v262, -2.0
        %v391 = vmax.f32 %v263, -2.0
        %v392 = vmax.f32 %v264, -2.0
        %v393 = vmax.f32 %v265, -2.0
        %v394 = vmax.f32 %v266, -2.0
        %v395 = vmin.f32 %v267, 2.0
        %v396 = vmin.f32 %v268, 2.0
        %v397 = vmin.f32 %v269, 2.0
        %v398 = vmin.f32 %v270, 2.0
        %v399 = vmin.f32 %v271, 2.0
        %v400 = vmin.f32 %v272, 2.0
        %v401 = vmin.f32 %v273, 2.0
        %v402 = vmin.f32 %v274, 2.0
        %v403 = vmin.f32 %v275, 2.0
        %v404 = vmin.f32 %v276, 2.0
        %v405 = vmin.f32 %v277, 2.0
        %v406 = vmin.f32 %v278, 2.0
        %v407 = vmin.f32 %v279, 2.0
        %v408 = vmin.f32 %v280, 2.0
        %v409 = vmin.f32 %v281, 2.0
        %v410 = vmin.f32 %v282, 2.0
        %v411 = vmin.f32 %v283, 2.0
        %v412 = vmin.f32 %v284, 2.0
        %v413 = vmin.f32 %v285, 2.0
        %v414 = vmin.f32 %v286, 2.0
        %v415 = vmin.f32 %v287, 2.0
        %v416 = vmin.f32 %v288, 2.0
        %v417 = vmin.f32 %v289, 2.0
        %v418 = vmin.f32 %v290, 2.0
        %v419 = vmin.f32 %v291, 2.0
        %v420 = vmin.f32 %v292, 2.0
        %v421 = vmin.f32 %v293, 2.0
        %v422 = vmin.f32 %v294, 2.0
        %v423 = vmin.f32 %v295, 2.0
        %v424 = vmin.f32 %v296, 2.0
        %v425 = vmin.f32 %v297, 2.0
        %v426 = vmin.f32 %v298, 2.0
        %v427 = vmin.f32 %v299, 2.0
        %v428 = vmin.f32 %v300, 2.0
        %v429 = vmin.f32 %v301, 2.0
        %v430 = vmin.f32 %v302, 2.0
        %v431 = vmin.f32 %v303, 2.0
        %v432 = vmin.f32 %v304, 2.0
        %v433 = vmin.f32 %v305, 2.0
        %v434 = vmin.f32 %v306, 2.0
        %v435 = vmin.f32 %v307, 2.0
        %v436 = vmin.f32 %v308, 2.0
        %v437 = vmin.f32 %v309, 2.0
        %v438 = vmin.f32 %v310, 2.0
        %v439 = vmin.f32 %v311, 2.0
        %v440 = vmin.f32 %v312, 2.0
        %v441 = vmin.f32 %v313, 2.0
        %v442 = vmin.f32 %v314, 2.0
        %v443 = vmin.f32 %v315, 2.0
        %v444 = vmin.f32 %v316, 2.0
        %v445 = vmin.f32 %v317, 2.0
        %v446 = vmin.f32 %v318, 2.0
        %v447 = vmin.f32 %v319, 2.0
        %v448 = vmin.f32 %v320, 2.0
        %v449 = vmin.f32 %v321, 2.0
        %v450 = vmin.f32 %v322, 2.0
        %v451 = vmin.f32 %v323, 2.0
        %v452 = vmin.f32 %v324, 2.0
        %v453 = vmin.f32 %v325, 2.0
        %v454 = vmin.f32 %v326, 2.0
        %v455 = vmin.f32 %v327, 2.0
        %v456 = vmin.f32 %v328, 2.0
        %v457 = vmin.f32 %v329, 2.0
        %v458 = vmin.f32 %v330, 2.0
        %v459 = vmin.f32 %v331, 2.0
        %v460 = vmin.f32 %v332, 2.0
        %v461 = vmin.f32 %v333, 2.0
        %v462 = vmin.f32 %v334, 2.0
        %v463 = vmin.f32 %v335, 2.0
        %v464 = vmin.f32 %v336, 2.0
        %v465 = vmin.f32 %v337, 2.0
        %v466 = vmin.f32 %v338, 2.0
        %v467 = vmin.f32 %v339, 2.0
        %v468 = vmin.f32 %v340, 2.0
        %v469 = vmin.f32 %v341, 2.0
        %v470 = vmin.f32 %v342, 2.0
        %v471 = vmin.f32 %v343, 2.0
        %v472 = vmin.f32 %v344, 2.0
        %v473 = vmin.f32 %v345, 2.0
        %v474 = vmin.f32 %v346, 2.0
        %v475 = vmin.f32 %v347, 2.0
        %v476 = vmin.f32 %v348, 2.0
        %v477 = vmin.f32 %v349, 2.0
        %v478 = vmin.f32 %v350, 2.0
        %v479 = vmin.f32 %v351, 2.0
        %v480 = vmin.f32 %v352, 2.0
        %v481 = vmin.f32 %v353, 2.0
        %v482 = vmin.f32 %v354, 2.0
        %v483 = vmin.f32 %v355, 2.0
        %v484 = vmin.f32 %v356, 2.0
        %v485 = vmin.f32 %v357, 2.0
        %v486 = vmin.f32 %v358, 2.0
        %v487 = vmin.f32 %v359, 2.0
        %v488 = vmin.f32 %v360, 2.0
        %v489 = vmin.f32 %v361, 2.0
        %v490 = vmin.f32 %v362, 2.0
        %v491 = vmin.f32 %v363, 2.0
        %v492 = vmin.f32 %v364, 2.0
        %v493 = vmin.f32 %v365, 2.0
        %v494 = vmin.f32 %v366, 2.0
        %v495 = vmin.f32 %v367, 2.0
        %v496 = vmin.f32 %v368, 2.0
        %v497 = vmin.f32 %v369, 2.0
        %v498 = vmin.f32 %v370, 2.0
        %v499 = vmin.f32 %v371, 2.0
        %v500 = vmin.f32 %v372, 2.0
        %v501 = vmin.f32 %v373, 2.0
        %v502 = vmin.f32 %v374, 2.0
        %v503 = vmin.f32 %v375, 2.0
        %v504 = vmin.f32 %v376, 2.0
        %v505 = vmin.f32 %v377, 2.0
        %v506 = vmin.f32 %v378, 2.0
        %v507 = vmin.f32 %v379, 2.0
        %v508 = vmin.f32 %v380, 2.0
        %v509 = vmin.f32 %v381, 2.0
        %v510 = vmin.f32 %v382, 2.0
        %v511 = vmin.f32 %v383, 2.0
        %v512 = vmin.f32 %v384, 2.0
        %v513 = vmin.f32 %v385, 2.0
        %v514 = vmin.f32 %v386, 2.0
        %v515 = vmin.f32 %v387, 2.0
        %v516 = vmin.f32 %v388, 2.0
        %v517 = vmin.f32 %v389, 2.0
        %v518 = vmin.f32 %v390, 2.0
        %v519 = vmin.f32 %v391, 2.0
        %v520 = vmin.f32 %v392, 2.0
        %v521 = vmin.f32 %v393, 2.0
        %v522 = vmin.f32 %v394, 2.0
        %523 = vst [vmem:[%s136] sm:$0xff] %v395
        %524 = vst [vmem:[%s136 + $0x8] sm:$0xff] %v396
        %525 = vst [vmem:[%s136 + $0x10] sm:$0xff] %v397
        %526 = vst [vmem:[%s136 + $0x18] sm:$0xff] %v398
        %527 = vst [vmem:[%s136 + $0x20] sm:$0xff] %v399
        %528 = vst [vmem:[%s136 + $0x28] sm:$0xff] %v400
        %529 = vst [vmem:[%s136 + $0x30] sm:$0xff] %v401
        %530 = vst [vmem:[%s136 + $0x38] sm:$0xff] %v402
        %531 = vst [vmem:[%s136 + $0x40] sm:$0xff] %v403
        %532 = vst [vmem:[%s136 + $0x48] sm:$0xff] %v404
        %533 = vst [vmem:[%s136 + $0x50] sm:$0xff] %v405
        %534 = vst [vmem:[%s136 + $0x58] sm:$0xff] %v406
        %535 = vst [vmem:[%s136 + $0x60] sm:$0xff] %v407
        %536 = vst [vmem:[%s136 + $0x68] sm:$0xff] %v408
        %537 = vst [vmem:[%s136 + $0x70] sm:$0xff] %v409
        %538 = vst [vmem:[%s136 + $0x78] sm:$0xff] %v410
        %539 = vst [vmem:[%s136 + $0x80] sm:$0xff] %v411
        %540 = vst [vmem:[%s136 + $0x88] sm:$0xff] %v412
        %541 = vst [vmem:[%s136 + $0x90] sm:$0xff] %v413
        %542 = vst [vmem:[%s136 + $0x98] sm:$0xff] %v414
        %543 = vst [vmem:[%s136 + $0xa0] sm:$0xff] %v415
        %544 = vst [vmem:[%s136 + $0xa8] sm:$0xff] %v416
        %545 = vst [vmem:[%s136 + $0xb0] sm:$0xff] %v417
        %546 = vst [vmem:[%s136 + $0xb8] sm:$0xff] %v418
        %547 = vst [vmem:[%s136 + $0xc0] sm:$0xff] %v419
        %548 = vst [vmem:[%s136 + $0xc8] sm:$0xff] %v420
        %549 = vst [vmem:[%s136 + $0xd0] sm:$0xff] %v421
        %550 = vst [vmem:[%s136 + $0xd8] sm:$0xff] %v422
        %551 = vst [vmem:[%s136 + $0xe0] sm:$0xff] %v423
        %552 = vst [vmem:[%s136 + $0xe8] sm:$0xff] %v424
        %553 = vst [vmem:[%s136 + $0xf0] sm:$0xff] %v425
        %554 = vst [vmem:[%s136 + $0xf8] sm:$0xff] %v426
        %555 = vst [vmem:[%s136 + $0x100] sm:$0xff] %v427
        %556 = vst [vmem:[%s136 + $0x108] sm:$0xff] %v428
        %557 = vst [vmem:[%s136 + $0x110] sm:$0xff] %v429
        %558 = vst [vmem:[%s136 + $0x118] sm:$0xff] %v430
        %559 = vst [vmem:[%s136 + $0x120] sm:$0xff] %v431
        %560 = vst [vmem:[%s136 + $0x128] sm:$0xff] %v432
        %561 = vst [vmem:[%s136 + $0x130] sm:$0xff] %v433
        %562 = vst [vmem:[%s136 + $0x138] sm:$0xff] %v434
        %563 = vst [vmem:[%s136 + $0x140] sm:$0xff] %v435
        %564 = vst [vmem:[%s136 + $0x148] sm:$0xff] %v436
        %565 = vst [vmem:[%s136 + $0x150] sm:$0xff] %v437
        %566 = vst [vmem:[%s136 + $0x158] sm:$0xff] %v438
        %567 = vst [vmem:[%s136 + $0x160] sm:$0xff] %v439
        %568 = vst [vmem:[%s136 + $0x168] sm:$0xff] %v440
        %569 = vst [vmem:[%s136 + $0x170] sm:$0xff] %v441
        %570 = vst [vmem:[%s136 + $0x178] sm:$0xff] %v442
        %571 = vst [vmem:[%s136 + $0x180] sm:$0xff] %v443
        %572 = vst [vmem:[%s136 + $0x188] sm:$0xff] %v444
        %573 = vst [vmem:[%s136 + $0x190] sm:$0xff] %v445
        %574 = vst [vmem:[%s136 + $0x198] sm:$0xff] %v446
        %575 = vst [vmem:[%s136 + $0x1a0] sm:$0xff] %v447
        %576 = vst [vmem:[%s136 + $0x1a8] sm:$0xff] %v448
        %577 = vst [vmem:[%s136 + $0x1b0] sm:$0xff] %v449
        %578 = vst [vmem:[%s136 + $0x1b8] sm:$0xff] %v450
        %579 = vst [vmem:[%s136 + $0x1c0] sm:$0xff] %v451
        %580 = vst [vmem:[%s136 + $0x1c8] sm:$0xff] %v452
        %581 = vst [vmem:[%s136 + $0x1d0] sm:$0xff] %v453
        %582 = vst [vmem:[%s136 + $0x1d8] sm:$0xff] %v454
        %583 = vst [vmem:[%s136 + $0x1e0] sm:$0xff] %v455
        %584 = vst [vmem:[%s136 + $0x1e8] sm:$0xff] %v456
        %585 = vst [vmem:[%s136 + $0x1f0] sm:$0xff] %v457
        %586 = vst [vmem:[%s136 + $0x1f8] sm:$0xff] %v458
        %587 = vst [vmem:[%s136 + $0x200] sm:$0xff] %v459
        %588 = vst [vmem:[%s136 + $0x208] sm:$0xff] %v460
        %589 = vst [vmem:[%s136 + $0x210] sm:$0xff] %v461
        %590 = vst [vmem:[%s136 + $0x218] sm:$0xff] %v462
        %591 = vst [vmem:[%s136 + $0x220] sm:$0xff] %v463
        %592 = vst [vmem:[%s136 + $0x228] sm:$0xff] %v464
        %593 = vst [vmem:[%s136 + $0x230] sm:$0xff] %v465
        %594 = vst [vmem:[%s136 + $0x238] sm:$0xff] %v466
        %595 = vst [vmem:[%s136 + $0x240] sm:$0xff] %v467
        %596 = vst [vmem:[%s136 + $0x248] sm:$0xff] %v468
        %597 = vst [vmem:[%s136 + $0x250] sm:$0xff] %v469
        %598 = vst [vmem:[%s136 + $0x258] sm:$0xff] %v470
        %599 = vst [vmem:[%s136 + $0x260] sm:$0xff] %v471
        %600 = vst [vmem:[%s136 + $0x268] sm:$0xff] %v472
        %601 = vst [vmem:[%s136 + $0x270] sm:$0xff] %v473
        %602 = vst [vmem:[%s136 + $0x278] sm:$0xff] %v474
        %603 = vst [vmem:[%s136 + $0x280] sm:$0xff] %v475
        %604 = vst [vmem:[%s136 + $0x288] sm:$0xff] %v476
        %605 = vst [vmem:[%s136 + $0x290] sm:$0xff] %v477
        %606 = vst [vmem:[%s136 + $0x298] sm:$0xff] %v478
        %607 = vst [vmem:[%s136 + $0x2a0] sm:$0xff] %v479
        %608 = vst [vmem:[%s136 + $0x2a8] sm:$0xff] %v480
        %609 = vst [vmem:[%s136 + $0x2b0] sm:$0xff] %v481
        %610 = vst [vmem:[%s136 + $0x2b8] sm:$0xff] %v482
        %611 = vst [vmem:[%s136 + $0x2c0] sm:$0xff] %v483
        %612 = vst [vmem:[%s136 + $0x2c8] sm:$0xff] %v484
        %613 = vst [vmem:[%s136 + $0x2d0] sm:$0xff] %v485
        %614 = vst [vmem:[%s136 + $0x2d8] sm:$0xff] %v486
        %615 = vst [vmem:[%s136 + $0x2e0] sm:$0xff] %v487
        %616 = vst [vmem:[%s136 + $0x2e8] sm:$0xff] %v488
        %617 = vst [vmem:[%s136 + $0x2f0] sm:$0xff] %v489
        %618 = vst [vmem:[%s136 + $0x2f8] sm:$0xff] %v490
        %619 = vst [vmem:[%s136 + $0x300] sm:$0xff] %v491
        %620 = vst [vmem:[%s136 + $0x308] sm:$0xff] %v492
        %621 = vst [vmem:[%s136 + $0x310] sm:$0xff] %v493
        %622 = vst [vmem:[%s136 + $0x318] sm:$0xff] %v494
        %623 = vst [vmem:[%s136 + $0x320] sm:$0xff] %v495
        %624 = vst [vmem:[%s136 + $0x328] sm:$0xff] %v496
        %625 = vst [vmem:[%s136 + $0x330] sm:$0xff] %v497
        %626 = vst [vmem:[%s136 + $0x338] sm:$0xff] %v498
        %627 = vst [vmem:[%s136 + $0x340] sm:$0xff] %v499
        %628 = vst [vmem:[%s136 + $0x348] sm:$0xff] %v500
        %629 = vst [vmem:[%s136 + $0x350] sm:$0xff] %v501
        %630 = vst [vmem:[%s136 + $0x358] sm:$0xff] %v502
        %631 = vst [vmem:[%s136 + $0x360] sm:$0xff] %v503
        %632 = vst [vmem:[%s136 + $0x368] sm:$0xff] %v504
        %633 = vst [vmem:[%s136 + $0x370] sm:$0xff] %v505
        %634 = vst [vmem:[%s136 + $0x378] sm:$0xff] %v506
        %635 = vst [vmem:[%s136 + $0x380] sm:$0xff] %v507
        %636 = vst [vmem:[%s136 + $0x388] sm:$0xff] %v508
        %637 = vst [vmem:[%s136 + $0x390] sm:$0xff] %v509
        %638 = vst [vmem:[%s136 + $0x398] sm:$0xff] %v510
        %639 = vst [vmem:[%s136 + $0x3a0] sm:$0xff] %v511
        %640 = vst [vmem:[%s136 + $0x3a8] sm:$0xff] %v512
        %641 = vst [vmem:[%s136 + $0x3b0] sm:$0xff] %v513
        %642 = vst [vmem:[%s136 + $0x3b8] sm:$0xff] %v514
        %643 = vst [vmem:[%s136 + $0x3c0] sm:$0xff] %v515
        %644 = vst [vmem:[%s136 + $0x3c8] sm:$0xff] %v516
        %645 = vst [vmem:[%s136 + $0x3d0] sm:$0xff] %v517
        %646 = vst [vmem:[%s136 + $0x3d8] sm:$0xff] %v518
        %647 = vst [vmem:[%s136 + $0x3e0] sm:$0xff] %v519
        %648 = vst [vmem:[%s136 + $0x3e8] sm:$0xff] %v520
        %649 = vst [vmem:[%s136 + $0x3f0] sm:$0xff] %v521
        %650 = vst [vmem:[%s136 + $0x3f8] sm:$0xff] %v522
        %s651 = sand.u32 %s52, 1
        %s652 = scalar_lea.sflag [#allocation4], %s651
        %s653 = sand.u32 %s52, 1
        %s654 = smul.addr %s653, 1024
        %s655 = scalar_lea.vmem [#allocation5], %s654
        // Predicated region
        $region29: #{tpu_custom_call.1} parent=23 // pred_check
          %p656 = pneg %p62
        $region30: #{tpu_custom_call.1} parent=23 // pred_check_branch
          %658 = sbr.rel (%p656) target = $region32
        $region31: #{tpu_custom_call.1} parent=23 // pred_region
          %s659 = smul.u32 128, %s18
          %661 = vsyncadd %s652, 0
          %s662 = smul.addr %s659, 8
          %s663 = scalar_lea.hbm %s1, %s662
          %s664 = sshll.u32 %s655, 4
          %s665 = int_to_ptr.vmem [resolvable:$true] %s664
          %s666 = sshll.u32 %s663, 4
          %s667 = int_to_ptr.hbm [resolvable:$true] %s666
          %672 = dma.vmem_to_hbm [thread:$0]  %s665, 16384, %s667, %s652, 128, 128, 8
        $region32: #{tpu_custom_call.1} parent=23 // pred_fallthru
          _
      $region24: #{tpu_custom_call.1} parent=5 // pred_fallthru
        _
      %p673 = scmp.le.s32.totalorder 2, %s13
      // Predicated region
      $region33: #{tpu_custom_call.1} parent=5 // pred_check
        %p674 = pneg %p673
      $region34: #{tpu_custom_call.1} parent=5 // pred_check_branch
        %676 = sbr.rel (%p674) target = $region36
      $region35: #{tpu_custom_call.1} parent=5 // pred_region
        %s677 = ssub.s32 %s13, 2
        // Predicated region
        $region37: #{tpu_custom_call.1} parent=35 // pred_check
          %p678 = pneg %p68
        $region38: #{tpu_custom_call.1} parent=35 // pred_check_branch
          %680 = sbr.rel (%p678) target = $region40
        $region39: #{tpu_custom_call.1} parent=35 // pred_region
          %s681 = sand.u32 %s53, 1
          %s682 = scalar_lea.sflag [#allocation4], %s681
          %s683 = sand.u32 %s53, 1
          %s684 = smul.addr %s683, 1024
          %s685 = scalar_lea.vmem [#allocation5], %s684
          %687 = dma.done %s682, 16384
        $region40: #{tpu_custom_call.1} parent=35 // pred_fallthru
          _
      $region36: #{tpu_custom_call.1} parent=5 // pred_fallthru
        _
    $region6: #{tpu_custom_call.1} parent=1 // loop_footer
      %s17 = sadd.s32 1, %s13
    $region7: #{tpu_custom_call.1} parent=1 // loop_footer_branch
      %12 = sbr.rel target = $region3
    $region8: #{tpu_custom_call.1} parent=1 // loop_exit
      _
    %688 = vsyncpa [#allocation3], 1
    %s689 = scalar_lea.sflag [#allocation3], 1
    %690 = vsyncpa %s689, 1
    %691 = vsyncpa [#allocation4], 1
    %s692 = scalar_lea.sflag [#allocation4], 1
    %693 = vsyncpa %s692, 1

</llo_original>
